<compile_context>
chip_gen: v5e
topology: v5e:2x2
jax: 0.10.0
libtpu: 0.0.40
codegen_flags: <defaults>
</compile_context>

<pallas_src>
import re

import jax
import jax.numpy as jnp
from jax.experimental import pallas as pl
from jax.experimental.pallas import tpu as pltpu


# ----------------------------------------------------------------------------
# Kernel
# ----------------------------------------------------------------------------
def _mlp_kernel(x_ref, w1_ref, w2_ref, w3_ref, o_ref):
    """Three chained MXU matmuls; biases folded via the ones-carrier row."""
    # x_ref : (2, TB)   row 0 = inputs, row 1 = 1.0 (bias carrier)
    # w1_ref: (41, 2)   rows 0..39 = [W1 | b1], row 40 = [0, 1]
    # w2_ref: (41, 41)  rows 0..39 = [W2 | b2], row 40 = e_40
    # w3_ref: (1, 41)   [W3 | b3]
    h1 = jnp.maximum(
        jnp.dot(w1_ref[...], x_ref[...], preferred_element_type=jnp.float32),
        0.0)                                                      # (41, TB)
    h2 = jnp.maximum(
        jnp.dot(w2_ref[...], h1, preferred_element_type=jnp.float32),
        0.0)                                                      # (41, TB)
    o_ref[...] = jnp.dot(
        w3_ref[...], h2, preferred_element_type=jnp.float32
    ).astype(o_ref.dtype)                                         # (1, TB)


# ----------------------------------------------------------------------------
# Tiling / VMEM budgeting helpers
# ----------------------------------------------------------------------------
def _round_up(n, m):
    return ((n + m - 1) // m) * m


def _tpu_generation():
    try:
        kind = jax.devices()[0].device_kind.lower()
    except Exception:
        return 0
    m = re.search(r"(\d+)", kind)
    return int(m.group(1)) if m else 0


def _tile_budget():
    """(max batch-tile lanes, vmem_limit_bytes) per TPU generation."""
    gen = _tpu_generation()
    if gen >= 7:
        # 64 MiB VMEM per TensorCore: keep well under ~48 MiB scoped.
        return 16384, 48 << 20
    if gen == 6:
        # 128 MiB VMEM: big tiles are fine with an explicit limit.
        return 32768, 100 << 20
    if gen == 5:
        # 128 MiB physical but ~16 MiB scoped default: raise it, cap the tile.
        return 8192, 64 << 20
    return 8192, 64 << 20   # unknown / older: conservative


def _choose_tile(B, cap):
    """Batch-tile (lane) width: multiple of 128, clamped to B, >=2 even tiles
    preferred so v7x's two TensorCores both get work."""
    B = max(int(B), 1)
    tb = max(128, min(cap, _round_up(pl.cdiv(B, 2), 128)))
    n_tiles = pl.cdiv(B, tb)
    if n_tiles > 2 and n_tiles % 2 == 1:
        tb_even = max(128, min(cap, _round_up(pl.cdiv(B, n_tiles + 1), 128)))
        if pl.cdiv(B, tb_even) % 2 == 0:
            tb = tb_even
    return tb


# ----------------------------------------------------------------------------
# Forward pass
# ----------------------------------------------------------------------------
def regressor_forward(x, params):
    """x: (B, 1) float32 -> (B, 1) float32 (PyTorch Regressor.forward)."""
    f32 = jnp.float32
    B = x.shape[0]

    cap, vmem_limit = _tile_budget()
    TB = _choose_tile(B, cap)
    Bp = _round_up(B, TB)

    # --- fold biases into the weights (tiny host-side prep, done once) ------
    w1 = params["w1"].astype(f32)                  # (40, 1)
    b1 = params["b1"].astype(f32).reshape(40, 1)
    w2 = params["w2"].astype(f32)                  # (40, 40)
    b2 = params["b2"].astype(f32).reshape(40, 1)
    w3 = params["w3"].astype(f32)                  # (1, 40)
    b3 = params["b3"].astype(f32).reshape(1, 1)

    w1_full = jnp.concatenate(
        [jnp.concatenate([w1, b1], axis=1),
         jnp.array([[0.0, 1.0]], f32)], axis=0)                        # (41, 2)
    carrier = jnp.concatenate(
        [jnp.zeros((1, 40), f32), jnp.ones((1, 1), f32)], axis=1)      # (1, 41)
    w2_full = jnp.concatenate(
        [jnp.concatenate([w2, b2], axis=1), carrier], axis=0)          # (41, 41)
    w3_full = jnp.concatenate([w3, b3], axis=1)                        # (1, 41)

    # --- lane-dense feature-major input with the ones-carrier row -----------
    x_row = x.reshape(1, B).astype(f32)
    x_aug = jnp.concatenate([x_row, jnp.ones_like(x_row)], axis=0)     # (2, B)
    if Bp != B:
        x_aug = jnp.pad(x_aug, ((0, 0), (0, Bp - B)))                  # (2, Bp)

    # Weights: full-array blocks + constant index_map -> resident in VMEM.
    resident = lambda a: pl.BlockSpec(a.shape, lambda i: (0,) * a.ndim)

    out_fm = pl.pallas_call(
        _mlp_kernel,
        out_shape=jax.ShapeDtypeStruct((1, Bp), f32),
        grid=(Bp // TB,),
        in_specs=[
            pl.BlockSpec((2, TB), lambda i: (0, i)),   # x tile, streamed
            resident(w1_full),
            resident(w2_full),
            resident(w3_full),
        ],
        out_specs=pl.BlockSpec((1, TB), lambda i: (0, i)),
        compiler_params=pltpu.CompilerParams(
            dimension_semantics=("parallel",),
            vmem_limit_bytes=vmem_limit,
        ),
    )(x_aug, w1_full, w2_full, w3_full)

    return out_fm[:, :B].reshape(B, 1)


# ----------------------------------------------------------------------------
# Params + pure-JAX reference
# ----------------------------------------------------------------------------
def init_params(key):
    """PyTorch-default U(-1/sqrt(fan_in), 1/sqrt(fan_in)) init, PyTorch layout."""
    k1, k2, k3, k4, k5, k6 = jax.random.split(key, 6)

    def u(k, shape, fan_in):
        bound = 1.0 / jnp.sqrt(fan_in)
        return jax.random.uniform(k, shape, jnp.float32, -bound, bound)

    return {
        "w1": u(k1, (40, 1), 1.0),    # Linear(1, 40).weight   (out, in)
        "b1": u(k2, (40,), 1.0),      # Linear(1, 40).bias
        "w2": u(k3, (40, 40), 40.0),  # Linear(40, 40).weight
        "b2": u(k4, (40,), 40.0),
        "w3": u(k5, (1, 40), 40.0),   # Linear(40, 1).weight
        "b3": u(k6, (1,), 40.0),
    }


def reference_forward(x, params):
    """Pure-JAX reference, PyTorch formulation y = x @ W.T + b."""
    hp = jax.lax.Precision.HIGHEST
    h1 = jnp.maximum(
        jnp.dot(x, params["w1"].T, precision=hp) + params["b1"], 0.0)
    h2 = jnp.maximum(
        jnp.dot(h1, params["w2"].T, precision=hp) + params["b2"], 0.0)
    return jnp.dot(h2, params["w3"].T, precision=hp) + params["b3"]


# ----------------------------------------------------------------------------
if __name__ == "__main__":
    key = jax.random.PRNGKey(0)
    kx1, kx2, kp = jax.random.split(key, 3)
    params = init_params(kp)

    # Small batch: pads to a single 128-lane tile, grid=(1,).
    x_small = jax.random.normal(kx1, (8, 1), dtype=jnp.float32)
    out_small = jax.block_until_ready(regressor_forward(x_small, params))
    ref_small = reference_forward(x_small, params)
    assert out_small.shape == (8, 1)
    assert jnp.allclose(out_small, ref_small, atol=5e-4, rtol=5e-4), \
        "mismatch vs reference (small batch)"

    # Non-multiple batch: exercises the multi-tile pipelined grid (2 even
    # tiles -> both v7x TensorCores busy) plus pad/slice handling.
    x_big = jax.random.normal(kx2, (2500, 1), dtype=jnp.float32)
    out_big = jax.block_until_ready(regressor_forward(x_big, params))
    ref_big = reference_forward(x_big, params)
    assert out_big.shape == (2500, 1)
    assert jnp.allclose(out_big, ref_big, atol=5e-4, rtol=5e-4), \
        "mismatch vs reference (large batch)"

    print("KERNEL_OK")
</pallas_src>

<mosaic_0001>
module attributes {stable_mosaic.version = 11 : i64} {
  func.func @_mlp_kernel(%arg0: i32, %arg1: memref<2x128xf32, #tpu.memory_space<vmem>>, %arg2: memref<41x2xf32, #tpu.memory_space<vmem>>, %arg3: memref<41x41xf32, #tpu.memory_space<vmem>>, %arg4: memref<1x41xf32, #tpu.memory_space<vmem>>, %arg5: memref<1x128xf32, #tpu.memory_space<vmem>>) attributes {dimension_semantics = [#tpu.dimension_semantics<parallel>], iteration_bounds = array<i64: 1>, scalar_prefetch = 0 : i64, scratch_operands = 0 : i64, tpu.core_type = #tpu.core_type<tc>, window_params = [{transform_indices = @transform_0, window_bounds = array<i64: 2, 128>}, {pipeline_mode = #tpu.pipeline_mode<synchronous>, transform_indices = @transform_1, window_bounds = array<i64: 41, 2>}, {pipeline_mode = #tpu.pipeline_mode<synchronous>, transform_indices = @transform_2, window_bounds = array<i64: 41, 41>}, {pipeline_mode = #tpu.pipeline_mode<synchronous>, transform_indices = @transform_3, window_bounds = array<i64: 1, 41>}, {transform_indices = @transform_4, window_bounds = array<i64: 1, 128>}]} {
    %c0 = arith.constant 0 : index
    %c0_0 = arith.constant 0 : index
    %0 = vector.load %arg2[%c0, %c0_0] : memref<41x2xf32, #tpu.memory_space<vmem>>, vector<41x2xf32>
    %c0_1 = arith.constant 0 : index
    %c0_2 = arith.constant 0 : index
    %1 = vector.load %arg1[%c0_1, %c0_2] : memref<2x128xf32, #tpu.memory_space<vmem>>, vector<2x128xf32>
    %cst = arith.constant dense<0.000000e+00> : vector<41x128xf32>
    %2 = tpu.matmul %0, %1, %cst {dimension_numbers = #tpu.dot_dimension_numbers<[1], [0], [0], [1], [0, 0, 1, 1], [], []>} : vector<41x2xf32>, vector<2x128xf32>, vector<41x128xf32> -> vector<41x128xf32>
    %cst_3 = arith.constant 0.000000e+00 : f32
    %3 = vector.broadcast %cst_3 : f32 to vector<41x128xf32>
    %4 = arith.maximumf %2, %3 : vector<41x128xf32>
    %c0_4 = arith.constant 0 : index
    %c0_5 = arith.constant 0 : index
    %5 = vector.load %arg3[%c0_4, %c0_5] : memref<41x41xf32, #tpu.memory_space<vmem>>, vector<41x41xf32>
    %cst_6 = arith.constant dense<0.000000e+00> : vector<41x128xf32>
    %6 = tpu.matmul %5, %4, %cst_6 {dimension_numbers = #tpu.dot_dimension_numbers<[1], [0], [0], [1], [0, 0, 1, 1], [], []>} : vector<41x41xf32>, vector<41x128xf32>, vector<41x128xf32> -> vector<41x128xf32>
    %cst_7 = arith.constant 0.000000e+00 : f32
    %7 = vector.broadcast %cst_7 : f32 to vector<41x128xf32>
    %8 = arith.maximumf %6, %7 : vector<41x128xf32>
    %c0_8 = arith.constant 0 : index
    %c0_9 = arith.constant 0 : index
    %9 = vector.load %arg4[%c0_8, %c0_9] : memref<1x41xf32, #tpu.memory_space<vmem>>, vector<1x41xf32>
    %cst_10 = arith.constant dense<0.000000e+00> : vector<1x128xf32>
    %10 = tpu.matmul %9, %8, %cst_10 {dimension_numbers = #tpu.dot_dimension_numbers<[1], [0], [0], [1], [0, 0, 1, 1], [], []>} : vector<1x41xf32>, vector<41x128xf32>, vector<1x128xf32> -> vector<1x128xf32>
    %c0_11 = arith.constant 0 : index
    %c0_12 = arith.constant 0 : index
    %11 = vector.load %arg5[%c0_11, %c0_12] : memref<1x128xf32, #tpu.memory_space<vmem>>, vector<1x128xf32>
    tpu.vector_store %arg5[%c0_11, %c0_12], %10 {strides = array<i32>} : memref<1x128xf32, #tpu.memory_space<vmem>>, vector<1x128xf32>,
    return
  }
  func.func @transform_0(%arg0: i32) -> (i32, i32) {
    %c0_i32 = arith.constant 0 : i32
    %c0_i32_0 = arith.constant 0 : i32
    return %c0_i32, %arg0 : i32, i32
  }
  func.func @transform_1(%arg0: i32) -> (i32, i32) {
    %c0_i32 = arith.constant 0 : i32
    %c0_i32_0 = arith.constant 0 : i32
    %c0_i32_1 = arith.constant 0 : i32
    return %c0_i32, %c0_i32_0 : i32, i32
  }
  func.func @transform_2(%arg0: i32) -> (i32, i32) {
    %c0_i32 = arith.constant 0 : i32
    %c0_i32_0 = arith.constant 0 : i32
    %c0_i32_1 = arith.constant 0 : i32
    return %c0_i32, %c0_i32_0 : i32, i32
  }
  func.func @transform_3(%arg0: i32) -> (i32, i32) {
    %c0_i32 = arith.constant 0 : i32
    %c0_i32_0 = arith.constant 0 : i32
    %c0_i32_1 = arith.constant 0 : i32
    return %c0_i32, %c0_i32_0 : i32, i32
  }
  func.func @transform_4(%arg0: i32) -> (i32, i32) {
    %c0_i32 = arith.constant 0 : i32
    %c0_i32_0 = arith.constant 0 : i32
    return %c0_i32, %arg0 : i32, i32
  }
}

</mosaic_0001>

<llo_original>
// kernel: tpu_custom_call.1
$region0: #{tpu_custom_call.1}
  #allocation0 [shape = 'u32[]', space=smem, size = 0x4, offset = 0x4, fixed_abs, tag = 'smem constant byte address 0x4 - core index']
  #allocation1 [shape = 'u32[72,128]{1,0:T(1,128)}', space=vmem, size = 0x9000, scoped, tag = 'internal scratch']
  %s0 = inlined_call_operand.vmem [shape: f32[2,128], index: 0, kind: input, shape index: {}]
  %s1 = inlined_call_operand.vmem [shape: f32[41,2], index: 1, kind: input, shape index: {}]
  %s2 = inlined_call_operand.vmem [shape: f32[41,41], index: 2, kind: input, shape index: {}]
  %s3 = inlined_call_operand.vmem [shape: f32[1,41], index: 3, kind: input, shape index: {}]
  %s4 = inlined_call_operand.hbm [shape: f32[1,128], index: 4, kind: output, shape index: {}]
  %s5 = sld [smem:[#allocation0]]
  $region26: #{tpu_custom_call.1} parent=0
    _
  %s7 = ssub.s32 1, %s5
  %s8 = scalar_select 0, %s7, %s5
  $region1: #{tpu_custom_call.1} parent=0
    #allocation2 [shape = 'u8[512]{0}', space=vmem, size = 0x400, scoped, tag = 'output window, operand 0, single buffered']
    #allocation3 [shape = 's32[1]{0}', space=sflag, size = 0x4, scoped, tag = 'scoped memory for tpu_custom_call.1']
    %9 = vsyncpa [#allocation3], 0
    // Predicated region
    $region2: #{tpu_custom_call.1} parent=1 // pred_check
      _
    $region3: #{tpu_custom_call.1} parent=1 // pred_check_branch
      %11 = sbr.rel (0) target = $region5
    $region4: #{tpu_custom_call.1} parent=1 // pred_region
      _
    $region5: #{tpu_custom_call.1} parent=1 // pred_fallthru
      _
    // Predicated region
    $region6: #{tpu_custom_call.1} parent=1 // pred_check
      _
    $region7: #{tpu_custom_call.1} parent=1 // pred_check_branch
      %13 = sbr.rel (0) target = $region9
    $region8: #{tpu_custom_call.1} parent=1 // pred_region
      _
    $region9: #{tpu_custom_call.1} parent=1 // pred_fallthru
      _
    // Predicated region
    $region10: #{tpu_custom_call.1} parent=1 // pred_check
      _
    $region11: #{tpu_custom_call.1} parent=1 // pred_check_branch
      %15 = sbr.rel (0) target = $region13
    $region12: #{tpu_custom_call.1} parent=1 // pred_region
      _
    $region13: #{tpu_custom_call.1} parent=1 // pred_fallthru
      _
    // Predicated region
    $region14: #{tpu_custom_call.1} parent=1 // pred_check
      _
    $region15: #{tpu_custom_call.1} parent=1 // pred_check_branch
      %17 = sbr.rel (0) target = $region17
    $region16: #{tpu_custom_call.1} parent=1 // pred_region
      _
    $region17: #{tpu_custom_call.1} parent=1 // pred_fallthru
      _
    %v18 = vld [vmem:[%s1] sm:$0xff]
    %v19 = vld [vmem:[%s1 + $0x8] sm:$0xff]
    %v20 = vld [vmem:[%s1 + $0x10] sm:$0xff]
    %v21 = vld [vmem:[%s1 + $0x18] sm:$0xff]
    %v22 = vld [vmem:[%s1 + $0x20] sm:$0xff]
    %v23 = vld [vmem:[%s1 + $0x28] sm:$0x1]
    %v24 = vld [vmem:[%s0] sm:$0x3]
    %vm25 = vcmask 15360
    %v27 = vsel %vm25, %v18, 0
    %v30 = vsel %vm25, %v19, 0
    %v33 = vsel %vm25, %v20, 0
    %v36 = vsel %vm25, %v21, 0
    %v39 = vsel %vm25, %v22, 0
    %v42 = vsel %vm25, %v23, 0
    %vm44 = vcmask 1041408
    %v46 = vsel %vm44, %v24, 0
    %48 = vmatpush.msra.mxu0 0.0
    %49 = vmatpush.msra.mxu0 0.0
    %50 = vmatpush.msra.mxu0 0.0
    %51 = vmatpush.msra.mxu0 0.0
    %52 = vmatpush.msra.mxu0 0.0
    %53 = vmatpush.msra.mxu0 0.0
    %54 = vmatpush.msra.mxu0 0.0
    %55 = vmatpush.msra.mxu0 0.0
    %56 = vmatpush.msra.mxu0 0.0
    %57 = vmatpush.msra.mxu0 0.0
    %58 = vmatpush.msra.mxu0 0.0
    %59 = vmatpush.msra.mxu0 0.0
    %60 = vmatpush.msra.mxu0 0.0
    %61 = vmatpush.msra.mxu0 0.0
    %62 = vmatpush.msra.mxu0 0.0
    %63 = vmatpush.msra.mxu0 %v46
    %64 = vmatmul.f32.gmra.mxu0 %v27
    %v65 = vpop.f32.mrf.mxu0
    %v66 = vadd.f32 0.0, %v65
    %67 = vmatmul.f32.gmra.mxu0 %v30
    %v68 = vpop.f32.mrf.mxu0
    %v69 = vadd.f32 0.0, %v68
    %70 = vmatmul.f32.gmra.mxu0 %v33
    %v71 = vpop.f32.mrf.mxu0
    %v72 = vadd.f32 0.0, %v71
    %73 = vmatmul.f32.gmra.mxu0 %v36
    %v74 = vpop.f32.mrf.mxu0
    %v75 = vadd.f32 0.0, %v74
    %76 = vmatmul.f32.gmra.mxu0 %v39
    %v77 = vpop.f32.mrf.mxu0
    %v78 = vadd.f32 0.0, %v77
    %79 = vmatmul.f32.gmra.mxu0 %v42
    %v80 = vpop.f32.mrf.mxu0
    %v81 = vadd.f32 0.0, %v80
    %82 = vdwg.mxu0
    %v83 = vmax.f32 %v66, 0.0
    %v84 = vmax.f32 %v69, 0.0
    %v85 = vmax.f32 %v72, 0.0
    %v86 = vmax.f32 %v75, 0.0
    %v87 = vmax.f32 %v78, 0.0
    %v88 = vmax.f32 %v81, 0.0
    %v89 = vld [vmem:[%s2] sm:$0xff]
    %v90 = vld [vmem:[%s2 + $0x8] sm:$0xff]
    %v91 = vld [vmem:[%s2 + $0x10] sm:$0xff]
    %v92 = vld [vmem:[%s2 + $0x18] sm:$0xff]
    %v93 = vld [vmem:[%s2 + $0x20] sm:$0xff]
    %v94 = vld [vmem:[%s2 + $0x28] sm:$0x1]
    %vm95 = vcmask 334848
    %v97 = vsel %vm95, %v89, 0
    %v100 = vsel %vm95, %v90, 0
    %v103 = vsel %vm95, %v91, 0
    %v106 = vsel %vm95, %v92, 0
    %v109 = vsel %vm95, %v93, 0
    %v112 = vsel %vm95, %v94, 0
    %vm114 = vcmask 1040384
    %v116 = vsel %vm114, %v88, 0
    %118 = vmatpush.msra.mxu0 0.0
    %119 = vmatpush.msra.mxu0 0.0
    %120 = vmatpush.msra.mxu0 0.0
    %121 = vmatpush.msra.mxu0 0.0
    %122 = vmatpush.msra.mxu0 0.0
    %123 = vmatpush.msra.mxu0 0.0
    %124 = vmatpush.msra.mxu0 0.0
    %125 = vmatpush.msra.mxu0 0.0
    %126 = vmatpush.msra.mxu0 0.0
    %127 = vmatpush.msra.mxu0 0.0
    %128 = vmatpush.msra.mxu0 %v116
    %129 = vmatpush.msra.mxu0 %v87
    %130 = vmatpush.msra.mxu0 %v86
    %131 = vmatpush.msra.mxu0 %v85
    %132 = vmatpush.msra.mxu0 %v84
    %133 = vmatpush.msra.mxu0 %v83
    %134 = vmatmul.f32.gmra.mxu0 %v97
    %v135 = vpop.f32.mrf.mxu0
    %v136 = vadd.f32 0.0, %v135
    %137 = vmatmul.f32.gmra.mxu0 %v100
    %v138 = vpop.f32.mrf.mxu0
    %v139 = vadd.f32 0.0, %v138
    %140 = vmatmul.f32.gmra.mxu0 %v103
    %v141 = vpop.f32.mrf.mxu0
    %v142 = vadd.f32 0.0, %v141
    %143 = vmatmul.f32.gmra.mxu0 %v106
    %v144 = vpop.f32.mrf.mxu0
    %v145 = vadd.f32 0.0, %v144
    %146 = vmatmul.f32.gmra.mxu0 %v109
    %v147 = vpop.f32.mrf.mxu0
    %v148 = vadd.f32 0.0, %v147
    %149 = vmatmul.f32.gmra.mxu0 %v112
    %v150 = vpop.f32.mrf.mxu0
    %v151 = vadd.f32 0.0, %v150
    %152 = vdwg.mxu0
    %v153 = vmax.f32 %v136, 0.0
    %v154 = vmax.f32 %v139, 0.0
    %v155 = vmax.f32 %v142, 0.0
    %v156 = vmax.f32 %v145, 0.0
    %v157 = vmax.f32 %v148, 0.0
    %v158 = vmax.f32 %v151, 0.0
    %v159 = vld [vmem:[%s3] sm:$0x1]
    %v161 = vsel %vm95, %v159, 0
    %v164 = vsel %vm114, %v158, 0
    %166 = vmatpush.msra.mxu0 0.0
    %167 = vmatpush.msra.mxu0 0.0
    %168 = vmatpush.msra.mxu0 0.0
    %169 = vmatpush.msra.mxu0 0.0
    %170 = vmatpush.msra.mxu0 0.0
    %171 = vmatpush.msra.mxu0 0.0
    %172 = vmatpush.msra.mxu0 0.0
    %173 = vmatpush.msra.mxu0 0.0
    %174 = vmatpush.msra.mxu0 0.0
    %175 = vmatpush.msra.mxu0 0.0
    %176 = vmatpush.msra.mxu0 %v164
    %177 = vmatpush.msra.mxu0 %v157
    %178 = vmatpush.msra.mxu0 %v156
    %179 = vmatpush.msra.mxu0 %v155
    %180 = vmatpush.msra.mxu0 %v154
    %181 = vmatpush.msra.mxu0 %v153
    %182 = vmatmul.f32.gmra.mxu0 %v161
    %v183 = vpop.f32.mrf.mxu0
    %v184 = vadd.f32 0.0, %v183
    %185 = vdwg.mxu0
    %186 = vst [vmem:[#allocation2] sm:$0x1] %v184
    // Predicated region
    $region18: #{tpu_custom_call.1} parent=1 // pred_check
      _
    $region19: #{tpu_custom_call.1} parent=1 // pred_check_branch
      %188 = sbr.rel (0) target = $region21
    $region20: #{tpu_custom_call.1} parent=1 // pred_region
      %190 = vsyncadd [#allocation3], 0
      %s192 = sshll.u32 [#allocation2], 4
      %s193 = int_to_ptr.vmem [resolvable:$true] %s192
      %s194 = sshll.u32 %s4, 4
      %s195 = int_to_ptr.hbm [resolvable:$true] %s194
      %197 = dma.vmem_to_hbm [thread:$0]  %s193, 16, %s195, [#allocation3]
    $region21: #{tpu_custom_call.1} parent=1 // pred_fallthru
      _
    // Predicated region
    $region22: #{tpu_custom_call.1} parent=1 // pred_check
      _
    $region23: #{tpu_custom_call.1} parent=1 // pred_check_branch
      %199 = sbr.rel (0) target = $region25
    $region24: #{tpu_custom_call.1} parent=1 // pred_region
      %201 = dma.done [#allocation3], 16
    $region25: #{tpu_custom_call.1} parent=1 // pred_fallthru
      _
    %202 = vsyncpa [#allocation3], 1

</llo_original>
